<compile_context>
chip_gen: v7x
topology: tpu7x:2x2x1
jax: 0.10.0
libtpu: 0.0.40
codegen_flags: <defaults>
</compile_context>

<pallas_src>
import functools

import numpy as np
import jax
import jax.numpy as jnp
from jax.experimental import pallas as pl
from jax.experimental.pallas import tpu as pltpu


def _round_up(x, m):
    return ((x + m - 1) // m) * m


def _lncc_kernel(m_ref, r_ref, k_ref, out_ref, p_ref, acc_ref, *, wdw):
    nb, d, hw = m_ref.shape
    g = 5 * nb

    Mb = m_ref[...]
    Rb = r_ref[...]

    # Build the 5-operand stack directly in VMEM scratch (no concatenate copy).
    p_ref[0 * nb:1 * nb, :, :] = Mb
    p_ref[1 * nb:2 * nb, :, :] = Rb
    p_ref[2 * nb:3 * nb, :, :] = Mb * Mb
    p_ref[3 * nb:4 * nb, :, :] = Rb * Rb
    p_ref[4 * nb:5 * nb, :, :] = Mb * Rb

    # (H,W) box filter: one MXU matmul with kron(B_H, B_W) (scale folded in).
    x = jnp.dot(p_ref[...].reshape(g * d, hw), k_ref[...],
                preferred_element_type=jnp.float32).reshape(g, d, hw)

    # D-axis box filter (zero padded): in-place partial-range accumulation.
    # p_ref is reused (overwritten with x) as the unshifted shift source.
    p_ref[...] = x
    acc_ref[...] = x
    for o in range(1, wdw + 1):
        if o >= d:
            break
        # neighbour at depth d'+o contributes to positions [0, d-o)
        acc_ref[:, :d - o, :] = acc_ref[:, :d - o, :] + p_ref[:, o:, :]
        # neighbour at depth d'-o contributes to positions [o, d)
        acc_ref[:, o:, :] = acc_ref[:, o:, :] + p_ref[:, :d - o, :]

    y = acc_ref[...]
    M_m = y[0 * nb:1 * nb]
    R_m = y[1 * nb:2 * nb]
    MM_m = y[2 * nb:3 * nb]
    RR_m = y[3 * nb:4 * nb]
    MR_m = y[4 * nb:5 * nb]

    # NOTE: like the PyTorch reference, MM_m - M_m**2 is intentionally NOT clamped.
    M_var = jnp.sqrt(MM_m - M_m * M_m + 1e-5)
    R_var = jnp.sqrt(RR_m - R_m * R_m + 1e-5)
    corr = (MR_m - M_m * R_m) / (M_var * R_var + 1e-5)

    partial = jnp.sum(corr.reshape(nb * d, hw))
    out_ref[...] = jnp.broadcast_to(partial, out_ref.shape)


def lncc(M, R, w=2):
    """M, R: (N, 1, D, H, W) float32. Returns scalar -mean(local NCC)."""
    N, C, D, H, W = M.shape
    assert C == 1
    size = 2 * w + 1
    scale = 1.0 / float(size ** 3)
    HW = H * W

    def band(n):
        idx = np.arange(n)
        return (np.abs(idx[:, None] - idx[None, :]) <= w).astype(np.float32)

    # Fused (H,W) box-filter matrix with the 1/(2w+1)^3 scale folded in.
    kron_pad_bytes = _round_up(HW, 8) * _round_up(HW, 128) * 4
    if kron_pad_bytes > 16 * 1024 * 1024:
        # TODO(synk): very large H*W volumes need the separable (B_H, B_W) path.
        raise NotImplementedError("H*W too large for the fused kron(B_H,B_W) filter")
    Kmat = jnp.asarray(np.kron(band(H), band(W)) * scale)   # (HW, HW)

    Mx = M.reshape(N, D, HW).astype(jnp.float32)
    Rx = R.reshape(N, D, HW).astype(jnp.float32)

    # ---- VMEM budget / batch-block sizing (accounts for (8,128) tile padding) ----
    try:
        vmem_cap = int(pltpu.get_tpu_info().vmem_capacity_bytes)
    except Exception:
        vmem_cap = 64 * 1024 * 1024          # conservative (v7x per-core VMEM)
    vmem_limit = int(min(96 * 1024 * 1024, (vmem_cap * 3) // 4))
    budget = (vmem_limit * 3) // 5

    vol_pad = _round_up(D, 8) * _round_up(HW, 128) * 4   # one padded volume
    # per batch element: 2 inputs double-buffered (4x) + two 5-stack scratch
    # buffers (10x) + matmul result / elementwise temporaries (~6x) ≈ 20 volumes.
    per_n = 20 * vol_pad + kron_pad_bytes // max(N, 1)
    nb_cap = max(1, budget // per_n)
    if N >= 2:
        # Keep at least two grid blocks so v7x can shard them over its 2 TCs;
        # on single-TC chips this only adds one ~0.35us pipeline step.
        nb_cap = min(nb_cap, max(1, N // 2))
    Nb = max(dv for dv in range(1, N + 1) if N % dv == 0 and dv <= nb_cap)
    num_blocks = N // Nb

    kernel = functools.partial(_lncc_kernel, wdw=w)

    partial_sums = pl.pallas_call(
        kernel,
        out_shape=jax.ShapeDtypeStruct((num_blocks, 1, 1), jnp.float32),
        grid_spec=pltpu.PrefetchScalarGridSpec(
            num_scalar_prefetch=0,
            grid=(num_blocks,),
            in_specs=[
                pl.BlockSpec((Nb, D, HW), lambda i: (i, 0, 0)),
                pl.BlockSpec((Nb, D, HW), lambda i: (i, 0, 0)),
                pl.BlockSpec((HW, HW), lambda i: (0, 0)),
            ],
            out_specs=pl.BlockSpec((1, 1, 1), lambda i: (i, 0, 0)),
            scratch_shapes=[
                pltpu.VMEM((5 * Nb, D, HW), jnp.float32),   # operand / filtered stack
                pltpu.VMEM((5 * Nb, D, HW), jnp.float32),   # D-axis accumulator
            ],
        ),
        compiler_params=pltpu.CompilerParams(
            dimension_semantics=("parallel",),
            vmem_limit_bytes=vmem_limit,
        ),
    )(Mx, Rx, Kmat)

    return -jnp.sum(partial_sums) / float(N * D * H * W)


def lncc_ref(M, R, w=2):
    """Pure-JAX reference matching the PyTorch module exactly."""
    size = 2 * w + 1
    kern = jnp.ones((1, 1, size, size, size), jnp.float32) / float(size ** 3)

    def conv(x):
        return jax.lax.conv_general_dilated(
            x, kern, window_strides=(1, 1, 1), padding=[(w, w)] * 3,
            dimension_numbers=("NCDHW", "OIDHW", "NCDHW"))

    M_m = conv(M)
    R_m = conv(R)
    MM_m = conv(M * M)
    RR_m = conv(R * R)
    MR_m = conv(M * R)
    M_var = jnp.sqrt(MM_m - M_m ** 2 + 1e-5)
    R_var = jnp.sqrt(RR_m - R_m ** 2 + 1e-5)
    corr = (MR_m - M_m * R_m) / (M_var * R_var + 1e-5)
    return -corr.mean()


if __name__ == "__main__":
    key = jax.random.PRNGKey(0)
    k1, k2 = jax.random.split(key)
    N, C, D, H, W = 2, 1, 8, 8, 8
    M = jax.random.normal(k1, (N, C, D, H, W), dtype=jnp.float32)
    R = jax.random.normal(k2, (N, C, D, H, W), dtype=jnp.float32)

    out = jax.block_until_ready(lncc(M, R, w=2))
    ref = jax.block_until_ready(lncc_ref(M, R, w=2))
    assert abs(float(out) - float(ref)) < 1e-4, (float(out), float(ref))
    print("KERNEL_OK")
</pallas_src>

<mosaic_0001>
module attributes {stable_mosaic.version = 11 : i64} {
  func.func @_lncc_kernel(%arg0: i32, %arg1: memref<1x8x64xf32, #tpu.memory_space<vmem>>, %arg2: memref<1x8x64xf32, #tpu.memory_space<vmem>>, %arg3: memref<64x64xf32, #tpu.memory_space<vmem>>, %arg4: memref<1x1x1xf32, #tpu.memory_space<vmem>>, %arg5: memref<5x8x64xf32, #tpu.memory_space<vmem>>, %arg6: memref<5x8x64xf32, #tpu.memory_space<vmem>>) attributes {dimension_semantics = [#tpu.dimension_semantics<parallel>], iteration_bounds = array<i64: 2>, scalar_prefetch = 0 : i64, scratch_operands = 2 : i64, tpu.core_type = #tpu.core_type<tc>, window_params = [{transform_indices = @transform_0, window_bounds = array<i64: 1, 8, 64>}, {transform_indices = @transform_1, window_bounds = array<i64: 1, 8, 64>}, {pipeline_mode = #tpu.pipeline_mode<synchronous>, transform_indices = @transform_2, window_bounds = array<i64: 64, 64>}, {transform_indices = @transform_3, window_bounds = array<i64: 1, 1, 1>}]} {
    %c0 = arith.constant 0 : index
    %c0_0 = arith.constant 0 : index
    %c0_1 = arith.constant 0 : index
    %0 = vector.load %arg1[%c0, %c0_0, %c0_1] : memref<1x8x64xf32, #tpu.memory_space<vmem>>, vector<1x8x64xf32>
    %c0_2 = arith.constant 0 : index
    %c0_3 = arith.constant 0 : index
    %c0_4 = arith.constant 0 : index
    %1 = vector.load %arg2[%c0_2, %c0_3, %c0_4] : memref<1x8x64xf32, #tpu.memory_space<vmem>>, vector<1x8x64xf32>
    %c0_5 = arith.constant 0 : index
    %c0_6 = arith.constant 0 : index
    %c0_7 = arith.constant 0 : index
    %2 = vector.load %arg5[%c0_5, %c0_6, %c0_7] : memref<5x8x64xf32, #tpu.memory_space<vmem>>, vector<1x8x64xf32>
    tpu.vector_store %arg5[%c0_5, %c0_6, %c0_7], %0 {strides = array<i32>} : memref<5x8x64xf32, #tpu.memory_space<vmem>>, vector<1x8x64xf32>,
    %c1 = arith.constant 1 : index
    %c0_8 = arith.constant 0 : index
    %c0_9 = arith.constant 0 : index
    %3 = vector.load %arg5[%c1, %c0_8, %c0_9] : memref<5x8x64xf32, #tpu.memory_space<vmem>>, vector<1x8x64xf32>
    tpu.vector_store %arg5[%c1, %c0_8, %c0_9], %1 {strides = array<i32>} : memref<5x8x64xf32, #tpu.memory_space<vmem>>, vector<1x8x64xf32>,
    %4 = arith.mulf %0, %0 : vector<1x8x64xf32>
    %c2 = arith.constant 2 : index
    %c0_10 = arith.constant 0 : index
    %c0_11 = arith.constant 0 : index
    %5 = vector.load %arg5[%c2, %c0_10, %c0_11] : memref<5x8x64xf32, #tpu.memory_space<vmem>>, vector<1x8x64xf32>
    tpu.vector_store %arg5[%c2, %c0_10, %c0_11], %4 {strides = array<i32>} : memref<5x8x64xf32, #tpu.memory_space<vmem>>, vector<1x8x64xf32>,
    %6 = arith.mulf %1, %1 : vector<1x8x64xf32>
    %c3 = arith.constant 3 : index
    %c0_12 = arith.constant 0 : index
    %c0_13 = arith.constant 0 : index
    %7 = vector.load %arg5[%c3, %c0_12, %c0_13] : memref<5x8x64xf32, #tpu.memory_space<vmem>>, vector<1x8x64xf32>
    tpu.vector_store %arg5[%c3, %c0_12, %c0_13], %6 {strides = array<i32>} : memref<5x8x64xf32, #tpu.memory_space<vmem>>, vector<1x8x64xf32>,
    %8 = arith.mulf %0, %1 : vector<1x8x64xf32>
    %c4 = arith.constant 4 : index
    %c0_14 = arith.constant 0 : index
    %c0_15 = arith.constant 0 : index
    %9 = vector.load %arg5[%c4, %c0_14, %c0_15] : memref<5x8x64xf32, #tpu.memory_space<vmem>>, vector<1x8x64xf32>
    tpu.vector_store %arg5[%c4, %c0_14, %c0_15], %8 {strides = array<i32>} : memref<5x8x64xf32, #tpu.memory_space<vmem>>, vector<1x8x64xf32>,
    %c0_16 = arith.constant 0 : index
    %c0_17 = arith.constant 0 : index
    %c0_18 = arith.constant 0 : index
    %10 = vector.load %arg5[%c0_16, %c0_17, %c0_18] : memref<5x8x64xf32, #tpu.memory_space<vmem>>, vector<5x8x64xf32>
    %11 = vector.shape_cast %10 : vector<5x8x64xf32> to vector<40x64xf32>
    %c0_19 = arith.constant 0 : index
    %c0_20 = arith.constant 0 : index
    %12 = vector.load %arg3[%c0_19, %c0_20] : memref<64x64xf32, #tpu.memory_space<vmem>>, vector<64x64xf32>
    %cst = arith.constant dense<0.000000e+00> : vector<40x64xf32>
    %13 = tpu.matmul %11, %12, %cst {dimension_numbers = #tpu.dot_dimension_numbers<[1], [0], [0], [1], [0, 0, 1, 1], [], []>} : vector<40x64xf32>, vector<64x64xf32>, vector<40x64xf32> -> vector<40x64xf32>
    %14 = vector.shape_cast %13 : vector<40x64xf32> to vector<5x8x64xf32>
    %c0_21 = arith.constant 0 : index
    %c0_22 = arith.constant 0 : index
    %c0_23 = arith.constant 0 : index
    %15 = vector.load %arg5[%c0_21, %c0_22, %c0_23] : memref<5x8x64xf32, #tpu.memory_space<vmem>>, vector<5x8x64xf32>
    tpu.vector_store %arg5[%c0_21, %c0_22, %c0_23], %14 {strides = array<i32>} : memref<5x8x64xf32, #tpu.memory_space<vmem>>, vector<5x8x64xf32>,
    %c0_24 = arith.constant 0 : index
    %c0_25 = arith.constant 0 : index
    %c0_26 = arith.constant 0 : index
    %16 = vector.load %arg6[%c0_24, %c0_25, %c0_26] : memref<5x8x64xf32, #tpu.memory_space<vmem>>, vector<5x8x64xf32>
    tpu.vector_store %arg6[%c0_24, %c0_25, %c0_26], %14 {strides = array<i32>} : memref<5x8x64xf32, #tpu.memory_space<vmem>>, vector<5x8x64xf32>,
    %c0_27 = arith.constant 0 : index
    %c0_28 = arith.constant 0 : index
    %c0_29 = arith.constant 0 : index
    %17 = vector.load %arg6[%c0_27, %c0_28, %c0_29] : memref<5x8x64xf32, #tpu.memory_space<vmem>>, vector<5x7x64xf32>
    %c0_30 = arith.constant 0 : index
    %c1_31 = arith.constant 1 : index
    %c0_32 = arith.constant 0 : index
    %18 = vector.load %arg5[%c0_30, %c1_31, %c0_32] : memref<5x8x64xf32, #tpu.memory_space<vmem>>, vector<5x7x64xf32>
    %19 = arith.addf %17, %18 : vector<5x7x64xf32>
    %c0_33 = arith.constant 0 : index
    %c0_34 = arith.constant 0 : index
    %c0_35 = arith.constant 0 : index
    %20 = vector.load %arg6[%c0_33, %c0_34, %c0_35] : memref<5x8x64xf32, #tpu.memory_space<vmem>>, vector<5x7x64xf32>
    tpu.vector_store %arg6[%c0_33, %c0_34, %c0_35], %19 {strides = array<i32>} : memref<5x8x64xf32, #tpu.memory_space<vmem>>, vector<5x7x64xf32>,
    %c0_36 = arith.constant 0 : index
    %c1_37 = arith.constant 1 : index
    %c0_38 = arith.constant 0 : index
    %21 = vector.load %arg6[%c0_36, %c1_37, %c0_38] : memref<5x8x64xf32, #tpu.memory_space<vmem>>, vector<5x7x64xf32>
    %c0_39 = arith.constant 0 : index
    %c0_40 = arith.constant 0 : index
    %c0_41 = arith.constant 0 : index
    %22 = vector.load %arg5[%c0_39, %c0_40, %c0_41] : memref<5x8x64xf32, #tpu.memory_space<vmem>>, vector<5x7x64xf32>
    %23 = arith.addf %21, %22 : vector<5x7x64xf32>
    %c0_42 = arith.constant 0 : index
    %c1_43 = arith.constant 1 : index
    %c0_44 = arith.constant 0 : index
    %24 = vector.load %arg6[%c0_42, %c1_43, %c0_44] : memref<5x8x64xf32, #tpu.memory_space<vmem>>, vector<5x7x64xf32>
    tpu.vector_store %arg6[%c0_42, %c1_43, %c0_44], %23 {strides = array<i32>} : memref<5x8x64xf32, #tpu.memory_space<vmem>>, vector<5x7x64xf32>,
    %c0_45 = arith.constant 0 : index
    %c0_46 = arith.constant 0 : index
    %c0_47 = arith.constant 0 : index
    %25 = vector.load %arg6[%c0_45, %c0_46, %c0_47] : memref<5x8x64xf32, #tpu.memory_space<vmem>>, vector<5x6x64xf32>
    %c0_48 = arith.constant 0 : index
    %c2_49 = arith.constant 2 : index
    %c0_50 = arith.constant 0 : index
    %26 = vector.load %arg5[%c0_48, %c2_49, %c0_50] : memref<5x8x64xf32, #tpu.memory_space<vmem>>, vector<5x6x64xf32>
    %27 = arith.addf %25, %26 : vector<5x6x64xf32>
    %c0_51 = arith.constant 0 : index
    %c0_52 = arith.constant 0 : index
    %c0_53 = arith.constant 0 : index
    %28 = vector.load %arg6[%c0_51, %c0_52, %c0_53] : memref<5x8x64xf32, #tpu.memory_space<vmem>>, vector<5x6x64xf32>
    tpu.vector_store %arg6[%c0_51, %c0_52, %c0_53], %27 {strides = array<i32>} : memref<5x8x64xf32, #tpu.memory_space<vmem>>, vector<5x6x64xf32>,
    %c0_54 = arith.constant 0 : index
    %c2_55 = arith.constant 2 : index
    %c0_56 = arith.constant 0 : index
    %29 = vector.load %arg6[%c0_54, %c2_55, %c0_56] : memref<5x8x64xf32, #tpu.memory_space<vmem>>, vector<5x6x64xf32>
    %c0_57 = arith.constant 0 : index
    %c0_58 = arith.constant 0 : index
    %c0_59 = arith.constant 0 : index
    %30 = vector.load %arg5[%c0_57, %c0_58, %c0_59] : memref<5x8x64xf32, #tpu.memory_space<vmem>>, vector<5x6x64xf32>
    %31 = arith.addf %29, %30 : vector<5x6x64xf32>
    %c0_60 = arith.constant 0 : index
    %c2_61 = arith.constant 2 : index
    %c0_62 = arith.constant 0 : index
    %32 = vector.load %arg6[%c0_60, %c2_61, %c0_62] : memref<5x8x64xf32, #tpu.memory_space<vmem>>, vector<5x6x64xf32>
    tpu.vector_store %arg6[%c0_60, %c2_61, %c0_62], %31 {strides = array<i32>} : memref<5x8x64xf32, #tpu.memory_space<vmem>>, vector<5x6x64xf32>,
    %c0_63 = arith.constant 0 : index
    %c0_64 = arith.constant 0 : index
    %c0_65 = arith.constant 0 : index
    %33 = vector.load %arg6[%c0_63, %c0_64, %c0_65] : memref<5x8x64xf32, #tpu.memory_space<vmem>>, vector<5x8x64xf32>
    %34 = vector.extract_strided_slice %33 {offsets = [0, 0, 0], sizes = [1, 8, 64], strides = [1, 1, 1]} : vector<5x8x64xf32> to vector<1x8x64xf32>
    %35 = vector.extract_strided_slice %33 {offsets = [1, 0, 0], sizes = [1, 8, 64], strides = [1, 1, 1]} : vector<5x8x64xf32> to vector<1x8x64xf32>
    %36 = vector.extract_strided_slice %33 {offsets = [2, 0, 0], sizes = [1, 8, 64], strides = [1, 1, 1]} : vector<5x8x64xf32> to vector<1x8x64xf32>
    %37 = vector.extract_strided_slice %33 {offsets = [3, 0, 0], sizes = [1, 8, 64], strides = [1, 1, 1]} : vector<5x8x64xf32> to vector<1x8x64xf32>
    %38 = vector.extract_strided_slice %33 {offsets = [4, 0, 0], sizes = [1, 8, 64], strides = [1, 1, 1]} : vector<5x8x64xf32> to vector<1x8x64xf32>
    %39 = arith.mulf %34, %34 : vector<1x8x64xf32>
    %40 = arith.subf %36, %39 : vector<1x8x64xf32>
    %cst_66 = arith.constant 9.99999974E-6 : f32
    %41 = vector.broadcast %cst_66 : f32 to vector<1x8x64xf32>
    %42 = arith.addf %40, %41 : vector<1x8x64xf32>
    %43 = math.sqrt %42 : vector<1x8x64xf32>
    %44 = arith.mulf %35, %35 : vector<1x8x64xf32>
    %45 = arith.subf %37, %44 : vector<1x8x64xf32>
    %cst_67 = arith.constant 9.99999974E-6 : f32
    %46 = vector.broadcast %cst_67 : f32 to vector<1x8x64xf32>
    %47 = arith.addf %45, %46 : vector<1x8x64xf32>
    %48 = math.sqrt %47 : vector<1x8x64xf32>
    %49 = arith.mulf %34, %35 : vector<1x8x64xf32>
    %50 = arith.subf %38, %49 : vector<1x8x64xf32>
    %51 = arith.mulf %43, %48 : vector<1x8x64xf32>
    %cst_68 = arith.constant 9.99999974E-6 : f32
    %52 = vector.broadcast %cst_68 : f32 to vector<1x8x64xf32>
    %53 = arith.addf %51, %52 : vector<1x8x64xf32>
    %54 = arith.divf %50, %53 : vector<1x8x64xf32>
    %55 = vector.shape_cast %54 : vector<1x8x64xf32> to vector<8x64xf32>
    %56 = vector.shape_cast %55 : vector<8x64xf32> to vector<1x8x64xf32>
    %cst_69 = arith.constant dense<0.000000e+00> : vector<1xf32>
    %57 = vector.multi_reduction <add>, %56, %cst_69 [1, 2] : vector<1x8x64xf32> to vector<1xf32>
    %58 = vector.shape_cast %57 : vector<1xf32> to vector<1x1x1xf32>
    %59 = vector.extract %58[0, 0, 0] : f32 from vector<1x1x1xf32>
    %60 = vector.broadcast %59 : f32 to vector<1x1x1xf32>
    %c0_70 = arith.constant 0 : index
    %c0_71 = arith.constant 0 : index
    %c0_72 = arith.constant 0 : index
    %61 = vector.load %arg4[%c0_70, %c0_71, %c0_72] : memref<1x1x1xf32, #tpu.memory_space<vmem>>, vector<1x1x1xf32>
    tpu.vector_store %arg4[%c0_70, %c0_71, %c0_72], %60 {strides = array<i32>} : memref<1x1x1xf32, #tpu.memory_space<vmem>>, vector<1x1x1xf32>,
    return
  }
  func.func @transform_0(%arg0: i32) -> (i32, i32, i32) {
    %c0_i32 = arith.constant 0 : i32
    %c0_i32_0 = arith.constant 0 : i32
    %c0_i32_1 = arith.constant 0 : i32
    return %arg0, %c0_i32, %c0_i32_0 : i32, i32, i32
  }
  func.func @transform_1(%arg0: i32) -> (i32, i32, i32) {
    %c0_i32 = arith.constant 0 : i32
    %c0_i32_0 = arith.constant 0 : i32
    %c0_i32_1 = arith.constant 0 : i32
    return %arg0, %c0_i32, %c0_i32_0 : i32, i32, i32
  }
  func.func @transform_2(%arg0: i32) -> (i32, i32) {
    %c0_i32 = arith.constant 0 : i32
    %c0_i32_0 = arith.constant 0 : i32
    %c0_i32_1 = arith.constant 0 : i32
    return %c0_i32, %c0_i32_0 : i32, i32
  }
  func.func @transform_3(%arg0: i32) -> (i32, i32, i32) {
    %c0_i32 = arith.constant 0 : i32
    %c0_i32_0 = arith.constant 0 : i32
    %c0_i32_1 = arith.constant 0 : i32
    return %arg0, %c0_i32, %c0_i32_0 : i32, i32, i32
  }
}

</mosaic_0001>

<llo_original>
// kernel: tpu_custom_call.1
$region0: #{tpu_custom_call.1}
  #allocation0 [shape = 'u32[]', space=smem, size = 0x4, offset = 0x4, fixed_abs, tag = 'smem constant byte address 0x4 - core index']
  #allocation1 [shape = 'u32[144,128]{1,0:T(1,128)}', space=vmem, size = 0x12000, scoped, tag = 'internal scratch']
  #allocation2 [shape = 'f32[5,8,64]{2,1,0:T(8,128)}', space=vmem, size = 0x5000, scoped, tag = 'scratch operand']
  #allocation3 [shape = 'f32[5,8,64]{2,1,0:T(8,128)}', space=vmem, size = 0x5000, scoped, tag = 'scratch operand']
  %s0 = inlined_call_operand.hbm [shape: f32[2,8,64], index: 0, kind: input, shape index: {}]
  %s1 = inlined_call_operand.hbm [shape: f32[2,8,64], index: 1, kind: input, shape index: {}]
  %s2 = inlined_call_operand.hbm [shape: f32[64,64], index: 2, kind: input, shape index: {}]
  %s3 = inlined_call_operand.vmem [shape: f32[2,1,1], index: 3, kind: output, shape index: {}]
  %s4 = sld [smem:[#allocation0]]
  $region57: #{tpu_custom_call.1} parent=0
    _
  %s6 = ssub.s32 1, %s4
  %s7 = scalar_select 0, %s6, %s4
  $region1: #{tpu_custom_call.1} parent=0
    #allocation4 [shape = 'u8[8192]{0}', space=vmem, size = 0x2000, scoped, tag = 'input window, operand 0']
    #allocation5 [shape = 's32[2]{0}', space=sflag, size = 0x8, scoped, tag = 'scoped memory for tpu_custom_call.1']
    #allocation6 [shape = 'u8[8192]{0}', space=vmem, size = 0x2000, scoped, tag = 'input window, operand 1']
    #allocation7 [shape = 's32[2]{0}', space=sflag, size = 0x8, scoped, tag = 'scoped memory for tpu_custom_call.1']
    #allocation8 [shape = 'u8[32768]{0}', space=vmem, size = 0x8000, scoped, tag = 'input window, operand 2, single buffered']
    %8 = vsyncpa [#allocation5], 0
    %s9 = scalar_lea.sflag [#allocation5], 1
    %10 = vsyncpa %s9, 0
    %11 = vsyncpa [#allocation7], 0
    %s12 = scalar_lea.sflag [#allocation7], 1
    %13 = vsyncpa %s12, 0
    loop: start=0, step=1, limit=4
    $region2: #{tpu_custom_call.1} parent=1 // loop_pre_header
      _
    $region3: #{tpu_custom_call.1} parent=1 // loop_header
      %s15 = sphi 0, %s19
      %p16 = scmp.ge.s32.totalorder %s15, 4
      %s25 = sphi 0, %s27
      %s28 = sphi 0, %s25
      %s29 = sphi 0, %s28
      %s45 = sphi 0, %s29
      %s51 = sphi 0, %s53
      %s54 = sphi 0, %s51
      %s55 = sphi 0, %s54
      %s71 = sphi 0, %s55
      %s75 = sphi 0, %s75
      %s77 = sphi 0, %s75
      %s78 = sphi 0, %s77
      %s92 = sphi 0, %s78
      %s98 = sphi 0, %s100
      %s101 = sphi 0, %s98
      %s102 = sphi 0, %s101
      %s118 = sphi 0, %s102
    $region4: #{tpu_custom_call.1} parent=1 // loop_header_branch
      %18 = sbr.rel (%p16) target = $region8
    $region5: #{tpu_custom_call.1} parent=1 // loop_body
      %s20 = ssub.s32 %s15, 1
      %s21 = ssub.s32 %s15, 2
      %s22 = sadd.s32 %s15, 1
      %s23 = ssub.s32 %s15, %s22
      %p24 = scmp.eq.s32.totalorder %s23, 0
      %s26 = sadd.s32 %s25, 1
      %s27 = scalar_select %p24, %s25, %s26
      %p30 = pneg %p24
      %p31 = scmp.eq.s32.totalorder %s15, 1
      %p32 = por %p30, %p31
      %p33 = scmp.ne.s32.totalorder %s25, %s28
      %p34 = scmp.eq.s32.totalorder %s15, 0
      %p35 = por %p33, %p34
      %p36 = scmp.ne.s32.totalorder %s25, %s28
      %p37 = scmp.eq.s32.totalorder %s20, 1
      %p38 = por %p36, %p37
      %p39 = scmp.ne.s32.totalorder %s28, %s29
      %p40 = scmp.eq.s32.totalorder %s20, 0
      %p41 = por %p39, %p40
      %p42 = scmp.ne.s32.totalorder %s28, %s29
      %p43 = scmp.eq.s32.totalorder %s21, 1
      %p44 = por %p42, %p43
      %p46 = scmp.ne.s32.totalorder %s29, %s45
      %p47 = scmp.eq.s32.totalorder %s21, 0
      %p48 = por %p46, %p47
      %s49 = ssub.s32 %s15, %s22
      %p50 = scmp.eq.s32.totalorder %s49, 0
      %s52 = sadd.s32 %s51, 1
      %s53 = scalar_select %p50, %s51, %s52
      %p56 = pneg %p50
      %p57 = scmp.eq.s32.totalorder %s15, 1
      %p58 = por %p56, %p57
      %p59 = scmp.ne.s32.totalorder %s51, %s54
      %p60 = scmp.eq.s32.totalorder %s15, 0
      %p61 = por %p59, %p60
      %p62 = scmp.ne.s32.totalorder %s51, %s54
      %p63 = scmp.eq.s32.totalorder %s20, 1
      %p64 = por %p62, %p63
      %p65 = scmp.ne.s32.totalorder %s54, %s55
      %p66 = scmp.eq.s32.totalorder %s20, 0
      %p67 = por %p65, %p66
      %p68 = scmp.ne.s32.totalorder %s54, %s55
      %p69 = scmp.eq.s32.totalorder %s21, 1
      %p70 = por %p68, %p69
      %p72 = scmp.ne.s32.totalorder %s55, %s71
      %p73 = scmp.eq.s32.totalorder %s21, 0
      %p74 = por %p72, %p73
      %s76 = sadd.s32 %s75, 1
      %p79 = scmp.eq.s32.totalorder %s15, 1
      %p80 = scmp.ne.s32.totalorder %s75, %s77
      %p81 = scmp.eq.s32.totalorder %s15, 0
      %p82 = por %p80, %p81
      %p83 = scmp.ne.s32.totalorder %s75, %s77
      %p84 = scmp.eq.s32.totalorder %s20, 1
      %p85 = por %p83, %p84
      %p86 = scmp.ne.s32.totalorder %s77, %s78
      %p87 = scmp.eq.s32.totalorder %s20, 0
      %p88 = por %p86, %p87
      %p89 = scmp.ne.s32.totalorder %s77, %s78
      %p90 = scmp.eq.s32.totalorder %s21, 1
      %p91 = por %p89, %p90
      %p93 = scmp.ne.s32.totalorder %s78, %s92
      %p94 = scmp.eq.s32.totalorder %s21, 0
      %p95 = por %p93, %p94
      %s96 = ssub.s32 %s15, %s22
      %p97 = scmp.eq.s32.totalorder %s96, 0
      %s99 = sadd.s32 %s98, 1
      %s100 = scalar_select %p97, %s98, %s99
      %p103 = pneg %p97
      %p104 = scmp.eq.s32.totalorder %s15, 1
      %p105 = por %p103, %p104
      %p106 = scmp.ne.s32.totalorder %s98, %s101
      %p107 = scmp.eq.s32.totalorder %s15, 0
      %p108 = por %p106, %p107
      %p109 = scmp.ne.s32.totalorder %s98, %s101
      %p110 = scmp.eq.s32.totalorder %s20, 1
      %p111 = por %p109, %p110
      %p112 = scmp.ne.s32.totalorder %s101, %s102
      %p113 = scmp.eq.s32.totalorder %s20, 0
      %p114 = por %p112, %p113
      %p115 = scmp.ne.s32.totalorder %s101, %s102
      %p116 = scmp.eq.s32.totalorder %s21, 1
      %p117 = por %p115, %p116
      %p119 = scmp.ne.s32.totalorder %s102, %s118
      %p120 = scmp.eq.s32.totalorder %s21, 0
      %p121 = por %p119, %p120
      %p122 = scmp.le.s32.totalorder 1, %s15
      %p123 = scmp.lt.s32.totalorder %s15, 3
      %p124 = pnand %p122, %p123
      %p125 = pneg %p124
      // Predicated region
      $region9: #{tpu_custom_call.1} parent=5 // pred_check
        _
      $region10: #{tpu_custom_call.1} parent=5 // pred_check_branch
        %127 = sbr.rel (%p124) target = $region12
      $region11: #{tpu_custom_call.1} parent=5 // pred_region
        %s128 = ssub.s32 %s15, 1
        // Predicated region
        $region13: #{tpu_custom_call.1} parent=11 // pred_check
          %p129 = pneg %p88
        $region14: #{tpu_custom_call.1} parent=11 // pred_check_branch
          %131 = sbr.rel (%p129) target = $region16
        $region15: #{tpu_custom_call.1} parent=11 // pred_region
          %s133 = ssub.s32 1024, 1024
          %134 = vsyncadd [#allocation7], %s133
          %s135 = sshll.u32 [#allocation8], 4
          %s136 = int_to_ptr.vmem [resolvable:$true] %s135
          %141 = dma.hbm_to_vmem [thread:$0]  %s2, 1024, %s136, [#allocation7], 128, 128, 8
        $region16: #{tpu_custom_call.1} parent=11 // pred_fallthru
          _
      $region12: #{tpu_custom_call.1} parent=5 // pred_fallthru
        _
      %p142 = scmp.lt.s32.totalorder %s15, 2
      // Predicated region
      $region17: #{tpu_custom_call.1} parent=5 // pred_check
        %p143 = pneg %p142
      $region18: #{tpu_custom_call.1} parent=5 // pred_check_branch
        %145 = sbr.rel (%p143) target = $region20
      $region19: #{tpu_custom_call.1} parent=5 // pred_region
        // Predicated region
        $region21: #{tpu_custom_call.1} parent=19 // pred_check
          %p146 = pneg %p35
        $region22: #{tpu_custom_call.1} parent=19 // pred_check_branch
          %148 = sbr.rel (%p146) target = $region24
        $region23: #{tpu_custom_call.1} parent=19 // pred_region
          %s149 = sand.u32 %s25, 1
          %s150 = scalar_lea.sflag [#allocation5], %s149
          %s151 = sand.u32 %s25, 1
          %s152 = smul.addr %s151, 8
          %s153 = scalar_lea.vmem [#allocation4], %s152
          %s155 = ssub.s32 128, 128
          %156 = vsyncadd %s150, %s155
          %s157 = smul.addr %s15, 128
          %s158 = scalar_lea.hbm %s0, %s157
          %s160 = sshll.u32 %s153, 4
          %s161 = int_to_ptr.vmem [resolvable:$true] %s160
          %163 = dma.hbm_to_vmem [thread:$0]  %s158, 128, %s161, %s150
        $region24: #{tpu_custom_call.1} parent=19 // pred_fallthru
          _
        // Predicated region
        $region25: #{tpu_custom_call.1} parent=19 // pred_check
          %p164 = pneg %p61
        $region26: #{tpu_custom_call.1} parent=19 // pred_check_branch
          %166 = sbr.rel (%p164) target = $region28
        $region27: #{tpu_custom_call.1} parent=19 // pred_region
          %s167 = sand.u32 %s15, 1
          %s168 = scalar_lea.sflag [#allocation7], %s167
          %s169 = sand.u32 %s51, 1
          %s170 = smul.addr %s169, 8
          %s171 = scalar_lea.vmem [#allocation6], %s170
          %s173 = ssub.s32 128, 128
          %174 = vsyncadd %s168, %s173
          %s175 = smul.addr %s15, 128
          %s176 = scalar_lea.hbm %s1, %s175
          %s178 = sshll.u32 %s171, 4
          %s179 = int_to_ptr.vmem [resolvable:$true] %s178
          %181 = dma.hbm_to_vmem [thread:$0]  %s176, 128, %s179, %s168
        $region28: #{tpu_custom_call.1} parent=19 // pred_fallthru
          _
      $region20: #{tpu_custom_call.1} parent=5 // pred_fallthru
        _
      %p182 = scmp.le.s32.totalorder 1, %s15
      %p183 = scmp.lt.s32.totalorder %s15, 3
      %p184 = pnand %p182, %p183
      %p185 = pneg %p184
      // Predicated region
      $region29: #{tpu_custom_call.1} parent=5 // pred_check
        _
      $region30: #{tpu_custom_call.1} parent=5 // pred_check_branch
        %187 = sbr.rel (%p184) target = $region32
      $region31: #{tpu_custom_call.1} parent=5 // pred_region
        %s188 = ssub.s32 %s15, 1
        %s189 = sand.u32 %s28, 1
        %s190 = scalar_lea.sflag [#allocation5], %s189
        %s191 = sand.u32 %s28, 1
        %s192 = smul.addr %s191, 8
        %s193 = scalar_lea.vmem [#allocation4], %s192
        // Predicated region
        $region33: #{tpu_custom_call.1} parent=31 // pred_check
          %p194 = pneg %p41
        $region34: #{tpu_custom_call.1} parent=31 // pred_check_branch
          %196 = sbr.rel (%p194) target = $region36
        $region35: #{tpu_custom_call.1} parent=31 // pred_region
          %197 = dma.done %s190, 128
        $region36: #{tpu_custom_call.1} parent=31 // pred_fallthru
          _
        %s198 = sand.u32 %s20, 1
        %s199 = scalar_lea.sflag [#allocation7], %s198
        %s200 = sand.u32 %s54, 1
        %s201 = smul.addr %s200, 8
        %s202 = scalar_lea.vmem [#allocation6], %s201
        // Predicated region
        $region37: #{tpu_custom_call.1} parent=31 // pred_check
          %p203 = pneg %p67
        $region38: #{tpu_custom_call.1} parent=31 // pred_check_branch
          %205 = sbr.rel (%p203) target = $region40
        $region39: #{tpu_custom_call.1} parent=31 // pred_region
          %206 = dma.done %s199, 128
        $region40: #{tpu_custom_call.1} parent=31 // pred_fallthru
          _
        // Predicated region
        $region41: #{tpu_custom_call.1} parent=31 // pred_check
          %p207 = pneg %p88
        $region42: #{tpu_custom_call.1} parent=31 // pred_check_branch
          %209 = sbr.rel (%p207) target = $region44
        $region43: #{tpu_custom_call.1} parent=31 // pred_region
          %210 = dma.done [#allocation7], 1024
        $region44: #{tpu_custom_call.1} parent=31 // pred_fallthru
          _
        %s211 = sand.u32 %s28, 1
        %s212 = scalar_lea.sflag [#allocation5], %s211
        %s213 = sand.u32 %s28, 1
        %s214 = smul.addr %s213, 8
        %s215 = scalar_lea.vmem [#allocation4], %s214
        %p216 = pneg %p41
        %p217 = pneg %p38
        %s218 = sand.u32 %s20, 1
        %s219 = scalar_lea.sflag [#allocation7], %s218
        %s220 = sand.u32 %s54, 1
        %s221 = smul.addr %s220, 8
        %s222 = scalar_lea.vmem [#allocation6], %s221
        %p223 = pneg %p67
        %p224 = pneg %p64
        %p225 = pneg %p88
        %p226 = pneg %p85
        %p227 = pneg %p114
        %p228 = pneg %p111
        %p229 = scmp.lt.s32.totalorder %s20, 1
        %s230 = scalar_select %p229, %s20, 1
        %s231 = scalar_lea.vmem %s3, %s230
        %p232 = scmp.lt.s32.totalorder %s20, 1
        %s233 = scalar_select %p232, %s20, 1
        %s234 = scalar_lea.vmem %s3, %s233
        %v235 = vld [vmem:[%s193] sm:$0xff]
        %v236 = vld [vmem:[%s202] sm:$0xff]
        %vm237 = vcmask 523264
        %238 = vst.msk [vmem:[#allocation2] sm:$0xff] %vm237, %v235
        %s239 = scalar_lea.vmem [#allocation2], 8
        %240 = vst.msk [vmem:[%s239] sm:$0xff] %vm237, %v236
        %v241 = vmul.f32 %v235, %v235
        %s242 = scalar_lea.vmem [#allocation2], 16
        %243 = vst.msk [vmem:[%s242] sm:$0xff] %vm237, %v241
        %v244 = vmul.f32 %v236, %v236
        %s245 = scalar_lea.vmem [#allocation2], 24
        %246 = vst.msk [vmem:[%s245] sm:$0xff] %vm237, %v244
        %v247 = vmul.f32 %v235, %v236
        %s248 = scalar_lea.vmem [#allocation2], 32
        %249 = vst.msk [vmem:[%s248] sm:$0xff] %vm237, %v247
        %v250 = vld [vmem:[#allocation2] sm:$0xff]
        %v251 = vld [vmem:[#allocation2 + $0x8] sm:$0xff]
        %v252 = vld [vmem:[#allocation2 + $0x10] sm:$0xff]
        %v253 = vld [vmem:[#allocation2 + $0x18] sm:$0xff]
        %v254 = vld [vmem:[#allocation2 + $0x20] sm:$0xff]
        %v255 = vld [vmem:[#allocation8] sm:$0xff]
        %v256 = vld [vmem:[#allocation8 + $0x8] sm:$0xff]
        %v257 = vld [vmem:[#allocation8 + $0x10] sm:$0xff]
        %v258 = vld [vmem:[#allocation8 + $0x18] sm:$0xff]
        %v259 = vld [vmem:[#allocation8 + $0x20] sm:$0xff]
        %v260 = vld [vmem:[#allocation8 + $0x28] sm:$0xff]
        %v261 = vld [vmem:[#allocation8 + $0x30] sm:$0xff]
        %v262 = vld [vmem:[#allocation8 + $0x38] sm:$0xff]
        %v264 = vsel %vm237, %v250, 0
        %v267 = vsel %vm237, %v251, 0
        %v270 = vsel %vm237, %v252, 0
        %v273 = vsel %vm237, %v253, 0
        %v276 = vsel %vm237, %v254, 0
        %278 = vmatprep.subr.mxu0 0.0
        %279 = vmatpush1.msra.mxu0 %v255
        %280 = vmatprep.subr.mxu0 0.0
        %281 = vmatpush1.msra.mxu0 %v256
        %282 = vmatprep.subr.mxu0 0.0
        %283 = vmatpush1.msra.mxu0 %v257
        %284 = vmatprep.subr.mxu0 0.0
        %285 = vmatpush1.msra.mxu0 %v258
        %286 = vmatprep.subr.mxu0 0.0
        %287 = vmatpush1.msra.mxu0 %v259
        %288 = vmatprep.subr.mxu0 0.0
        %289 = vmatpush1.msra.mxu0 %v260
        %290 = vmatprep.subr.mxu0 0.0
        %291 = vmatpush1.msra.mxu0 %v261
        %292 = vmatprep.subr.mxu0 0.0
        %293 = vmatpush1.msra.mxu0 %v262
        %294 = vmatprep.subr.mxu0 0.0
        %295 = vmatpush1.msra.mxu0 0.0
        %296 = vmatprep.subr.mxu0 0.0
        %297 = vmatpush1.msra.mxu0 0.0
        %298 = vmatprep.subr.mxu0 0.0
        %299 = vmatpush1.msra.mxu0 0.0
        %300 = vmatprep.subr.mxu0 0.0
        %301 = vmatpush1.msra.mxu0 0.0
        %302 = vmatprep.subr.mxu0 0.0
        %303 = vmatpush1.msra.mxu0 0.0
        %304 = vmatprep.subr.mxu0 0.0
        %305 = vmatpush1.msra.mxu0 0.0
        %306 = vmatprep.subr.mxu0 0.0
        %307 = vmatpush1.msra.mxu0 0.0
        %308 = vmatprep.subr.mxu0 0.0
        %309 = vmatpush1.msra.mxu0 0.0
        %310 = vmatprep.subr.mxu0 0.0
        %311 = vmatpush1.msra.mxu0 0.0
        %312 = vmatprep.subr.mxu0 0.0
        %313 = vmatpush1.msra.mxu0 0.0
        %314 = vmatprep.subr.mxu0 0.0
        %315 = vmatpush1.msra.mxu0 0.0
        %316 = vmatprep.subr.mxu0 0.0
        %317 = vmatpush1.msra.mxu0 0.0
        %318 = vmatprep.subr.mxu0 0.0
        %319 = vmatpush1.msra.mxu0 0.0
        %320 = vmatprep.subr.mxu0 0.0
        %321 = vmatpush1.msra.mxu0 0.0
        %322 = vmatprep.subr.mxu0 0.0
        %323 = vmatpush1.msra.mxu0 0.0
        %324 = vmatprep.subr.mxu0 0.0
        %325 = vmatpush1.msra.mxu0 0.0
        %326 = vmatprep.subr.mxu0 0.0
        %327 = vmatpush1.msra.mxu0 0.0
        %328 = vmatprep.subr.mxu0 0.0
        %329 = vmatpush1.msra.mxu0 0.0
        %330 = vmatprep.subr.mxu0 0.0
        %331 = vmatpush1.msra.mxu0 0.0
        %332 = vmatprep.subr.mxu0 0.0
        %333 = vmatpush1.msra.mxu0 0.0
        %334 = vmatprep.subr.mxu0 0.0
        %335 = vmatpush1.msra.mxu0 0.0
        %336 = vmatprep.subr.mxu0 0.0
        %337 = vmatpush1.msra.mxu0 0.0
        %338 = vmatprep.subr.mxu0 0.0
        %339 = vmatpush1.msra.mxu0 0.0
        %340 = vmatprep.subr.mxu0 0.0
        %341 = vmatpush1.msra.mxu0 0.0
        %342 = vmatprep.mubr.f32.mxu0 0.0
        %343 = vmatmul.mubr.f32.gmra.mrb[0].mxu0 %v264
        %v344 = vpop.f32.mrb[0].mxu0
        %v345 = vadd.f32 0.0, %v344
        %v346 = vpop.f32.mrb[0].mxu0
        %347 = vmatprep.mubr.f32.mxu0 0.0
        %348 = vmatmul.mubr.f32.gmra.mrb[0].mxu0 %v267
        %v349 = vpop.f32.mrb[0].mxu0
        %v350 = vadd.f32 0.0, %v349
        %v351 = vpop.f32.mrb[0].mxu0
        %352 = vmatprep.mubr.f32.mxu0 0.0
        %353 = vmatmul.mubr.f32.gmra.mrb[0].mxu0 %v270
        %v354 = vpop.f32.mrb[0].mxu0
        %v355 = vadd.f32 0.0, %v354
        %v356 = vpop.f32.mrb[0].mxu0
        %357 = vmatprep.mubr.f32.mxu0 0.0
        %358 = vmatmul.mubr.f32.gmra.mrb[0].mxu0 %v273
        %v359 = vpop.f32.mrb[0].mxu0
        %v360 = vadd.f32 0.0, %v359
        %v361 = vpop.f32.mrb[0].mxu0
        %362 = vmatprep.mubr.f32.mxu0 0.0
        %363 = vmatmul.mubr.f32.gmra.mrb[0].mxu0 %v276
        %v364 = vpop.f32.mrb[0].mxu0
        %v365 = vadd.f32 0.0, %v364
        %v366 = vpop.f32.mrb[0].mxu0
        %367 = vdwg.mxu0
        %368 = vst.msk [vmem:[#allocation2] sm:$0xff] %vm237, %v345
        %369 = vst.msk [vmem:[#allocation2 + $0x8] sm:$0xff] %vm237, %v350
        %370 = vst.msk [vmem:[#allocation2 + $0x10] sm:$0xff] %vm237, %v355
        %371 = vst.msk [vmem:[#allocation2 + $0x18] sm:$0xff] %vm237, %v360
        %372 = vst.msk [vmem:[#allocation2 + $0x20] sm:$0xff] %vm237, %v365
        %373 = vst.msk [vmem:[#allocation3] sm:$0xff] %vm237, %v345
        %374 = vst.msk [vmem:[#allocation3 + $0x8] sm:$0xff] %vm237, %v350
        %375 = vst.msk [vmem:[#allocation3 + $0x10] sm:$0xff] %vm237, %v355
        %376 = vst.msk [vmem:[#allocation3 + $0x18] sm:$0xff] %vm237, %v360
        %377 = vst.msk [vmem:[#allocation3 + $0x20] sm:$0xff] %vm237, %v365
        %v378 = vld [vmem:[#allocation3] sm:$0x7f]
        %v379 = vld [vmem:[#allocation3 + $0x8] sm:$0x7f]
        %v380 = vld [vmem:[#allocation3 + $0x10] sm:$0x7f]
        %v381 = vld [vmem:[#allocation3 + $0x18] sm:$0x7f]
        %v382 = vld [vmem:[#allocation3 + $0x20] sm:$0x7f]
        %v383 = vld [vmem:[#allocation2 + $0x1] sm:$0x7f]
        %v384 = vld [vmem:[#allocation2 + $0x9] sm:$0x7f]
        %v385 = vld [vmem:[#allocation2 + $0x11] sm:$0x7f]
        %v386 = vld [vmem:[#allocation2 + $0x19] sm:$0x7f]
        %v387 = vld [vmem:[#allocation2 + $0x21] sm:$0x7f]
        %v388 = vadd.f32 %v378, %v383
        %v389 = vadd.f32 %v379, %v384
        %v390 = vadd.f32 %v380, %v385
        %v391 = vadd.f32 %v381, %v386
        %v392 = vadd.f32 %v382, %v387
        %vm393 = vcmask 522240
        %394 = vst.msk [vmem:[#allocation3] sm:$0x7f] %vm393, %v388
        %395 = vst.msk [vmem:[#allocation3 + $0x8] sm:$0x7f] %vm393, %v389
        %396 = vst.msk [vmem:[#allocation3 + $0x10] sm:$0x7f] %vm393, %v390
        %397 = vst.msk [vmem:[#allocation3 + $0x18] sm:$0x7f] %vm393, %v391
        %398 = vst.msk [vmem:[#allocation3 + $0x20] sm:$0x7f] %vm393, %v392
        %v399 = vld [vmem:[#allocation3 + $0x1] sm:$0x7f]
        %v400 = vld [vmem:[#allocation3 + $0x9] sm:$0x7f]
        %v401 = vld [vmem:[#allocation3 + $0x11] sm:$0x7f]
        %v402 = vld [vmem:[#allocation3 + $0x19] sm:$0x7f]
        %v403 = vld [vmem:[#allocation3 + $0x21] sm:$0x7f]
        %v404 = vld [vmem:[#allocation2] sm:$0x7f]
        %v405 = vld [vmem:[#allocation2 + $0x8] sm:$0x7f]
        %v406 = vld [vmem:[#allocation2 + $0x10] sm:$0x7f]
        %v407 = vld [vmem:[#allocation2 + $0x18] sm:$0x7f]
        %v408 = vld [vmem:[#allocation2 + $0x20] sm:$0x7f]
        %v409 = vadd.f32 %v399, %v404
        %v410 = vadd.f32 %v400, %v405
        %v411 = vadd.f32 %v401, %v406
        %v412 = vadd.f32 %v402, %v407
        %v413 = vadd.f32 %v403, %v408
        %414 = vst.msk [vmem:[#allocation3 + $0x1] sm:$0x7f] %vm393, %v409
        %415 = vst.msk [vmem:[#allocation3 + $0x9] sm:$0x7f] %vm393, %v410
        %416 = vst.msk [vmem:[#allocation3 + $0x11] sm:$0x7f] %vm393, %v411
        %417 = vst.msk [vmem:[#allocation3 + $0x19] sm:$0x7f] %vm393, %v412
        %418 = vst.msk [vmem:[#allocation3 + $0x21] sm:$0x7f] %vm393, %v413
        %v419 = vld [vmem:[#allocation3] sm:$0x3f]
        %v420 = vld [vmem:[#allocation3 + $0x8] sm:$0x3f]
        %v421 = vld [vmem:[#allocation3 + $0x10] sm:$0x3f]
        %v422 = vld [vmem:[#allocation3 + $0x18] sm:$0x3f]
        %v423 = vld [vmem:[#allocation3 + $0x20] sm:$0x3f]
        %v424 = vld [vmem:[#allocation2 + $0x2] sm:$0x3f]
        %v425 = vld [vmem:[#allocation2 + $0xa] sm:$0x3f]
        %v426 = vld [vmem:[#allocation2 + $0x12] sm:$0x3f]
        %v427 = vld [vmem:[#allocation2 + $0x1a] sm:$0x3f]
        %v428 = vld [vmem:[#allocation2 + $0x22] sm:$0x3f]
        %v429 = vadd.f32 %v419, %v424
        %v430 = vadd.f32 %v420, %v425
        %v431 = vadd.f32 %v421, %v426
        %v432 = vadd.f32 %v422, %v427
        %v433 = vadd.f32 %v423, %v428
        %vm434 = vcmask 521216
        %435 = vst.msk [vmem:[#allocation3] sm:$0x3f] %vm434, %v429
        %436 = vst.msk [vmem:[#allocation3 + $0x8] sm:$0x3f] %vm434, %v430
        %437 = vst.msk [vmem:[#allocation3 + $0x10] sm:$0x3f] %vm434, %v431
        %438 = vst.msk [vmem:[#allocation3 + $0x18] sm:$0x3f] %vm434, %v432
        %439 = vst.msk [vmem:[#allocation3 + $0x20] sm:$0x3f] %vm434, %v433
        %v440 = vld [vmem:[#allocation3 + $0x2] sm:$0x3f]
        %v441 = vld [vmem:[#allocation3 + $0xa] sm:$0x3f]
        %v442 = vld [vmem:[#allocation3 + $0x12] sm:$0x3f]
        %v443 = vld [vmem:[#allocation3 + $0x1a] sm:$0x3f]
        %v444 = vld [vmem:[#allocation3 + $0x22] sm:$0x3f]
        %v445 = vld [vmem:[#allocation2] sm:$0x3f]
        %v446 = vld [vmem:[#allocation2 + $0x8] sm:$0x3f]
        %v447 = vld [vmem:[#allocation2 + $0x10] sm:$0x3f]
        %v448 = vld [vmem:[#allocation2 + $0x18] sm:$0x3f]
        %v449 = vld [vmem:[#allocation2 + $0x20] sm:$0x3f]
        %v450 = vadd.f32 %v440, %v445
        %v451 = vadd.f32 %v441, %v446
        %v452 = vadd.f32 %v442, %v447
        %v453 = vadd.f32 %v443, %v448
        %v454 = vadd.f32 %v444, %v449
        %455 = vst.msk [vmem:[#allocation3 + $0x2] sm:$0x3f] %vm434, %v450
        %456 = vst.msk [vmem:[#allocation3 + $0xa] sm:$0x3f] %vm434, %v451
        %457 = vst.msk [vmem:[#allocation3 + $0x12] sm:$0x3f] %vm434, %v452
        %458 = vst.msk [vmem:[#allocation3 + $0x1a] sm:$0x3f] %vm434, %v453
        %459 = vst.msk [vmem:[#allocation3 + $0x22] sm:$0x3f] %vm434, %v454
        %v460 = vld [vmem:[#allocation3] sm:$0xff]
        %v461 = vld [vmem:[#allocation3 + $0x8] sm:$0xff]
        %v462 = vld [vmem:[#allocation3 + $0x10] sm:$0xff]
        %v463 = vld [vmem:[#allocation3 + $0x18] sm:$0xff]
        %v464 = vld [vmem:[#allocation3 + $0x20] sm:$0xff]
        %v465 = vmul.f32 %v460, %v460
        %v466 = vsub.f32 %v462, %v465
        %v467 = vadd.f32 %v466, 1e-05
        %v468 = vrsqrt.pop %v467
        %v469 = vmul.f32 %v467, %v468
        %vm470 = vcmp.eq.f32.partialorder %v467, inf
        %v471 = vsel %vm470, %v467, %v469
        %vm472 = vcmp.eq.f32.partialorder %v467, 0.0
        %v473 = vand.u32 %v467, 2147483648
        %v474 = vsel %vm472, %v473, %v471
        %v475 = vmul.f32 %v461, %v461
        %v476 = vsub.f32 %v463, %v475
        %v477 = vadd.f32 %v476, 1e-05
        %v478 = vrsqrt.pop %v477
        %v479 = vmul.f32 %v477, %v478
        %vm480 = vcmp.eq.f32.partialorder %v477, inf
        %v481 = vsel %vm480, %v477, %v479
        %vm482 = vcmp.eq.f32.partialorder %v477, 0.0
        %v483 = vand.u32 %v477, 2147483648
        %v484 = vsel %vm482, %v483, %v481
        %v485 = vmul.f32 %v460, %v461
        %v486 = vsub.f32 %v464, %v485
        %v487 = vmul.f32 %v474, %v484
        %v488 = vadd.f32 %v487, 1e-05
        %v489 = vrcp.pop %v488
        %v490 = vmul.f32 %v486, %v489
        %v491 = vsel %vm237, %v490, 0.0
        %492 = vadd.xlane.f32.xlu0 %v491
        %v493 = vpop.xlane.xlu0 %492
        %v494 = vrot.slane %v493, 4
        %v495 = vadd.f32 %v493, %v494
        %v496 = vrot.slane %v495, 2
        %v497 = vadd.f32 %v495, %v496
        %v498 = vrot.slane %v497, 1
        %v499 = vadd.f32 %v497, %v498
        %s500 = vtos %v499
        %v501 = vstv %s500
        %vm502 = vcmask 0
        %503 = vst.msk [vmem:[%s234] sm:$0x1] %vm502, %v501
        %p504 = scmp.lt.s32.totalorder %s20, 1
        %s505 = scalar_select %p504, %s20, 1
        %s506 = scalar_lea.vmem %s3, %s505
        // Predicated region
        $region45: #{tpu_custom_call.1} parent=31 // pred_check
          %p507 = pneg %p111
        $region46: #{tpu_custom_call.1} parent=31 // pred_check_branch
          %509 = sbr.rel (%p507) target = $region48
        $region47: #{tpu_custom_call.1} parent=31 // pred_region
          _
        $region48: #{tpu_custom_call.1} parent=31 // pred_fallthru
          _
      $region32: #{tpu_custom_call.1} parent=5 // pred_fallthru
        _
      %p510 = scmp.le.s32.totalorder 2, %s15
      // Predicated region
      $region49: #{tpu_custom_call.1} parent=5 // pred_check
        %p511 = pneg %p510
      $region50: #{tpu_custom_call.1} parent=5 // pred_check_branch
        %513 = sbr.rel (%p511) target = $region52
      $region51: #{tpu_custom_call.1} parent=5 // pred_region
        %s514 = ssub.s32 %s15, 2
        // Predicated region
        $region53: #{tpu_custom_call.1} parent=51 // pred_check
          %p515 = pneg %p117
        $region54: #{tpu_custom_call.1} parent=51 // pred_check_branch
          %517 = sbr.rel (%p515) target = $region56
        $region55: #{tpu_custom_call.1} parent=51 // pred_region
          %p518 = scmp.lt.s32.totalorder %s21, 1
          %s519 = scalar_select %p518, %s21, 1
          %s520 = scalar_lea.vmem %s3, %s519
        $region56: #{tpu_custom_call.1} parent=51 // pred_fallthru
          _
      $region52: #{tpu_custom_call.1} parent=5 // pred_fallthru
        _
    $region6: #{tpu_custom_call.1} parent=1 // loop_footer
      %s19 = sadd.s32 1, %s15
    $region7: #{tpu_custom_call.1} parent=1 // loop_footer_branch
      %14 = sbr.rel target = $region3
    $region8: #{tpu_custom_call.1} parent=1 // loop_exit
      _
    %521 = vsyncpa [#allocation5], 1
    %s522 = scalar_lea.sflag [#allocation5], 1
    %523 = vsyncpa %s522, 1
    %524 = vsyncpa [#allocation7], 1
    %s525 = scalar_lea.sflag [#allocation7], 1
    %526 = vsyncpa %s525, 1

</llo_original>
